<compile_context>
chip_gen: v7x
topology: tpu7x:2x2x1
jax: 0.10.0
libtpu: 0.0.40
codegen_flags: <defaults>
</compile_context>

<pallas_src>
import math

import jax
import jax.numpy as jnp
from jax.experimental import pallas as pl
from jax.experimental.pallas import tpu as pltpu


def _identity_kernel(x_ref, o_ref):
    # Pure passthrough: MHTModule.forward(x) == x
    o_ref[...] = x_ref[...]


def _vmem_capacity_bytes():
    """Best-effort query of per-core VMEM capacity; conservative fallback."""
    try:
        return int(pltpu.get_tpu_info().vmem_capacity_bytes)
    except Exception:
        return 64 * 1024 * 1024  # conservative (v7x-sized) default


def mht_module_forward(x):
    """Pallas implementation of MHTModule.forward (identity).

    x: (B, C, H, W) array, any float/int dtype.  Returns an array of the same
    shape/dtype.  The kernel aliases its input to its output so the copy can be
    elided when the caller donates `x` at a jit boundary.
    """
    orig_shape = x.shape
    dtype = x.dtype
    itemsize = jnp.dtype(dtype).itemsize
    total = math.prod(orig_shape)

    # Native packed sublane multiple per dtype (sub-32-bit packs along sublanes).
    if itemsize >= 4:
        sub = 8
    elif itemsize == 2:
        sub = 16
    else:
        sub = 32

    # Wide lane-dense layout -> unmasked full-width vector stores.
    LANES = 512  # large multiple of 128
    chunk = sub * LANES

    # Pad flat length up to a multiple of (sub * LANES) so the tiled path always
    # applies (no full-array VMEM fallback, no masked partial stores).
    padded_total = ((total + chunk - 1) // chunk) * chunk
    pad = padded_total - total

    xf = x.reshape(-1)
    if pad:
        xf = jnp.pad(xf, (0, pad))
    rows = padded_total // LANES           # multiple of `sub` by construction
    x2d = xf.reshape(rows, LANES)

    # ---- generation-aware block sizing -------------------------------------
    vmem_cap = _vmem_capacity_bytes()
    # ~8 MiB blocks on v5e/v6e (128 MiB VMEM), ~4 MiB on v7x (64 MiB VMEM).
    target_block_bytes = min(8 * 1024 * 1024, max(512 * 1024, vmem_cap // 16))

    row_bytes = LANES * itemsize
    units = rows // sub                      # rows measured in native sublane tiles
    target_units = max(1, min(units, target_block_bytes // (row_bytes * sub)))

    # Largest divisor of `units` that is <= target_units (keeps tile_rows a
    # multiple of `sub` and an exact divisor of rows).
    tu = target_units
    while units % tu != 0:
        tu -= 1
    # Prefer >= 2 grid steps so v7x can shard across its 2 TensorCores.
    if units // tu == 1 and units >= 2:
        tu2 = units // 2
        while units % tu2 != 0:
            tu2 -= 1
        tu = tu2

    tile_rows = tu * sub
    grid = (units // tu,)
    block_bytes = tile_rows * LANES * itemsize

    # Double-buffered input + output => ~4 live block buffers; add headroom.
    vmem_limit = min(
        int(vmem_cap * 3 // 4),
        max(16 * 1024 * 1024, 4 * block_bytes + 4 * 1024 * 1024),
    )

    out2d = pl.pallas_call(
        _identity_kernel,
        out_shape=jax.ShapeDtypeStruct((rows, LANES), dtype),
        grid_spec=pltpu.PrefetchScalarGridSpec(
            num_scalar_prefetch=0,
            grid=grid,
            in_specs=[pl.BlockSpec((tile_rows, LANES), lambda i: (i, 0))],
            out_specs=pl.BlockSpec((tile_rows, LANES), lambda i: (i, 0)),
        ),
        # Identity: let XLA reuse the input buffer for the output (free when the
        # caller donates the input at the jit boundary).
        input_output_aliases={0: 0},
        compiler_params=pltpu.CompilerParams(
            dimension_semantics=("parallel",),
            vmem_limit_bytes=vmem_limit,
        ),
        cost_estimate=pl.CostEstimate(
            flops=0,
            transcendentals=0,
            bytes_accessed=2 * total * itemsize,
        ),
    )(x2d)

    out_flat = out2d.reshape(-1)
    if pad:
        out_flat = out_flat[:total]
    return out_flat.reshape(orig_shape)


if __name__ == "__main__":
    key = jax.random.PRNGKey(0)
    # Small NCHW texture-module input.
    x = jax.random.normal(key, (2, 4, 16, 16), dtype=jnp.float32)

    y = mht_module_forward(x)
    y = jax.block_until_ready(y)

    # Verify identity semantics against the reference forward (return x).
    assert y.shape == x.shape and y.dtype == x.dtype
    assert bool(jnp.array_equal(y, x))
    print("KERNEL_OK")
</pallas_src>

<mosaic_0001>
module attributes {stable_mosaic.version = 11 : i64} {
  func.func @_identity_kernel(%arg0: i32, %arg1: memref<8x512xf32, #tpu.memory_space<vmem>>, %arg2: memref<8x512xf32, #tpu.memory_space<vmem>>) attributes {dimension_semantics = [#tpu.dimension_semantics<parallel>], iteration_bounds = array<i64: 1>, scalar_prefetch = 0 : i64, scratch_operands = 0 : i64, tpu.core_type = #tpu.core_type<tc>, window_params = [{transform_indices = @transform_0, window_bounds = array<i64: 8, 512>}, {transform_indices = @transform_1, window_bounds = array<i64: 8, 512>}]} {
    %c0 = arith.constant 0 : index
    %c0_0 = arith.constant 0 : index
    %0 = vector.load %arg1[%c0, %c0_0] : memref<8x512xf32, #tpu.memory_space<vmem>>, vector<8x512xf32>
    %c0_1 = arith.constant 0 : index
    %c0_2 = arith.constant 0 : index
    %1 = vector.load %arg2[%c0_1, %c0_2] : memref<8x512xf32, #tpu.memory_space<vmem>>, vector<8x512xf32>
    tpu.vector_store %arg2[%c0_1, %c0_2], %0 {strides = array<i32>} : memref<8x512xf32, #tpu.memory_space<vmem>>, vector<8x512xf32>,
    return
  }
  func.func @transform_0(%arg0: i32) -> (i32, i32) {
    %c0_i32 = arith.constant 0 : i32
    %c0_i32_0 = arith.constant 0 : i32
    return %arg0, %c0_i32 : i32, i32
  }
  func.func @transform_1(%arg0: i32) -> (i32, i32) {
    %c0_i32 = arith.constant 0 : i32
    %c0_i32_0 = arith.constant 0 : i32
    return %arg0, %c0_i32 : i32, i32
  }
}

</mosaic_0001>

<llo_original>
// kernel: tpu_custom_call.1
$region0: #{tpu_custom_call.1}
  #allocation0 [shape = 'u32[]', space=smem, size = 0x4, offset = 0x4, fixed_abs, tag = 'smem constant byte address 0x4 - core index']
  #allocation1 [shape = 'u32[144,128]{1,0:T(1,128)}', space=vmem, size = 0x12000, scoped, tag = 'internal scratch']
  %s0 = inlined_call_operand.hbm [shape: f32[8,512], index: 0, kind: input, shape index: {}, may-alias: {0,1}]
  %s1 = inlined_call_operand.hbm [shape: f32[8,512], index: 1, kind: output, shape index: {}, may-alias: {0,1}]
  %s2 = sld [smem:[#allocation0]]
  $region18: #{tpu_custom_call.1} parent=0
    _
  %s4 = ssub.s32 1, %s2
  %s5 = scalar_select 0, %s4, %s2
  $region1: #{tpu_custom_call.1} parent=0
    #allocation2 [shape = 'u8[16384]{0}', space=vmem, size = 0x4000, scoped, tag = 'input window, operand 0, single buffered']
    #allocation3 [shape = 's32[1]{0}', space=sflag, size = 0x4, scoped, tag = 'scoped memory for tpu_custom_call.1']
    #allocation4 [shape = 's32[1]{0}', space=sflag, size = 0x4, scoped, tag = 'scoped memory for tpu_custom_call.1']
    #allocation5 [shape = 'u8[16384]{0}', space=vmem, size = 0x4000, scoped, tag = 'output window, operand 0, single buffered']
    %6 = vsyncpa [#allocation3], 0
    %7 = vsyncpa [#allocation4], 0
    // Predicated region
    $region2: #{tpu_custom_call.1} parent=1 // pred_check
      _
    $region3: #{tpu_custom_call.1} parent=1 // pred_check_branch
      %9 = sbr.rel (0) target = $region5
    $region4: #{tpu_custom_call.1} parent=1 // pred_region
      %s11 = ssub.s32 512, 512
      %12 = vsyncadd [#allocation3], %s11
      %s14 = sshll.u32 [#allocation2], 4
      %s15 = int_to_ptr.vmem [resolvable:$true] %s14
      %17 = dma.hbm_to_vmem [thread:$0]  %s0, 512, %s15, [#allocation3]
    $region5: #{tpu_custom_call.1} parent=1 // pred_fallthru
      _
    // Predicated region
    $region6: #{tpu_custom_call.1} parent=1 // pred_check
      _
    $region7: #{tpu_custom_call.1} parent=1 // pred_check_branch
      %19 = sbr.rel (0) target = $region9
    $region8: #{tpu_custom_call.1} parent=1 // pred_region
      %20 = dma.done [#allocation3], 512
    $region9: #{tpu_custom_call.1} parent=1 // pred_fallthru
      _
    %v21 = vld [vmem:[#allocation2] sm:$0xff]
    %v22 = vld [vmem:[#allocation2 + $0x8] sm:$0xff]
    %v23 = vld [vmem:[#allocation2 + $0x10] sm:$0xff]
    %v24 = vld [vmem:[#allocation2 + $0x18] sm:$0xff]
    %25 = vst [vmem:[#allocation5] sm:$0xff] %v21
    %26 = vst [vmem:[#allocation5 + $0x8] sm:$0xff] %v22
    %27 = vst [vmem:[#allocation5 + $0x10] sm:$0xff] %v23
    %28 = vst [vmem:[#allocation5 + $0x18] sm:$0xff] %v24
    // Predicated region
    $region10: #{tpu_custom_call.1} parent=1 // pred_check
      _
    $region11: #{tpu_custom_call.1} parent=1 // pred_check_branch
      %30 = sbr.rel (0) target = $region13
    $region12: #{tpu_custom_call.1} parent=1 // pred_region
      %s32 = ssub.s32 512, 512
      %33 = vsyncadd [#allocation4], %s32
      %s35 = sshll.u32 [#allocation5], 4
      %s36 = int_to_ptr.vmem [resolvable:$true] %s35
      %38 = dma.vmem_to_hbm [thread:$0]  %s36, 512, %s1, [#allocation4]
    $region13: #{tpu_custom_call.1} parent=1 // pred_fallthru
      _
    // Predicated region
    $region14: #{tpu_custom_call.1} parent=1 // pred_check
      _
    $region15: #{tpu_custom_call.1} parent=1 // pred_check_branch
      %40 = sbr.rel (0) target = $region17
    $region16: #{tpu_custom_call.1} parent=1 // pred_region
      %41 = dma.done [#allocation4], 512
    $region17: #{tpu_custom_call.1} parent=1 // pred_fallthru
      _
    %42 = vsyncpa [#allocation3], 1
    %43 = vsyncpa [#allocation4], 1

</llo_original>
